<compile_context>
chip_gen: v7x
topology: tpu7x:2x2x1
jax: 0.10.0
libtpu: 0.0.40
codegen_flags: <defaults>
</compile_context>

<pallas_src>
import jax
import jax.numpy as jnp
from jax.experimental import pallas as pl
from jax.experimental.pallas import tpu as pltpu

ITEM = 64   # item_count (number of graph nodes)
EMB = 32    # embedding_size


def gcn_kernel(adj_ref, w1_ref, b1_ref, w2_ref, b2_ref, out_ref):
    # ---- layer 1: h1 = relu(adj @ W1 + b1)    (x = I  =>  x @ W1 == W1) ----
    h1 = jnp.dot(adj_ref[...], w1_ref[...],
                 preferred_element_type=jnp.float32) + b1_ref[...]
    h1 = jnp.maximum(h1, 0.0)
    # dropout: identity in eval mode

    # ---- layer 2: out = adj @ (h1 @ W2) + b2 ----
    s2 = jnp.dot(h1, w2_ref[...], preferred_element_type=jnp.float32)
    out_ref[...] = (jnp.dot(adj_ref[...], s2,
                            preferred_element_type=jnp.float32) + b2_ref[...])


def gcn_forward(adj, w1, b1, w2, b2):
    vmem = pl.BlockSpec(memory_space=pltpu.MemorySpace.VMEM)
    return pl.pallas_call(
        gcn_kernel,
        out_shape=jax.ShapeDtypeStruct((ITEM, EMB), jnp.float32),
        in_specs=[vmem, vmem, vmem, vmem, vmem],   # adj, W1, b1, W2, b2
        out_specs=vmem,
    )(adj, w1, b1, w2, b2)


def _reference(adj, w1, b1, w2, b2):
    # Pure-JAX reference of the module's forward (x = eye folds away).
    h = jnp.maximum(adj @ w1 + b1, 0.0)   # gcn1 + relu (dropout = identity)
    return adj @ (h @ w2) + b2            # gcn2


def _normalize(adj):
    """Row-normalize (matches GCN.normalize after adding self-loops)."""
    rowsum = adj.sum(axis=1, keepdims=True)
    r_inv = jnp.where(rowsum > 0, 1.0 / rowsum, 0.0)
    return adj * r_inv


if __name__ == "__main__":
    key = jax.random.PRNGKey(0)
    k_adj, k_w1, k_b1, k_w2, k_b2 = jax.random.split(key, 5)

    # Raw 0/1 symmetric adjacency, then add self-loops and row-normalize
    # (this is what GCN.__init__ does on the host).
    a = (jax.random.uniform(k_adj, (ITEM, ITEM)) < 0.15).astype(jnp.float32)
    a = jnp.maximum(a, a.T)
    adj = _normalize(a + jnp.eye(ITEM, dtype=jnp.float32))

    # GraphConvolution init: uniform(-1/sqrt(out_features), 1/sqrt(out_features))
    stdv = 1.0 / (EMB ** 0.5)
    w1 = jax.random.uniform(k_w1, (ITEM, EMB), jnp.float32, -stdv, stdv)
    b1 = jax.random.uniform(k_b1, (1, EMB), jnp.float32, -stdv, stdv)
    w2 = jax.random.uniform(k_w2, (EMB, EMB), jnp.float32, -stdv, stdv)
    b2 = jax.random.uniform(k_b2, (1, EMB), jnp.float32, -stdv, stdv)

    out = gcn_forward(adj, w1, b1, w2, b2)
    out = jax.block_until_ready(out)

    ref = _reference(adj, w1, b1, w2, b2)
    assert out.shape == (ITEM, EMB)
    assert jnp.allclose(out, ref, atol=1e-4, rtol=1e-4), \
        "mismatch vs pure-JAX reference"
    print("KERNEL_OK")
</pallas_src>

<mosaic_0001>
module attributes {stable_mosaic.version = 11 : i64} {
  func.func @gcn_kernel(%arg0: memref<64x64xf32, #tpu.memory_space<vmem>>, %arg1: memref<64x32xf32, #tpu.memory_space<vmem>>, %arg2: memref<1x32xf32, #tpu.memory_space<vmem>>, %arg3: memref<32x32xf32, #tpu.memory_space<vmem>>, %arg4: memref<1x32xf32, #tpu.memory_space<vmem>>, %arg5: memref<64x32xf32, #tpu.memory_space<vmem>>) attributes {dimension_semantics = [], scalar_prefetch = 0 : i64, scratch_operands = 0 : i64, tpu.core_type = #tpu.core_type<tc>} {
    %c0 = arith.constant 0 : index
    %c0_0 = arith.constant 0 : index
    %0 = vector.load %arg0[%c0, %c0_0] : memref<64x64xf32, #tpu.memory_space<vmem>>, vector<64x64xf32>
    %c0_1 = arith.constant 0 : index
    %c0_2 = arith.constant 0 : index
    %1 = vector.load %arg1[%c0_1, %c0_2] : memref<64x32xf32, #tpu.memory_space<vmem>>, vector<64x32xf32>
    %cst = arith.constant dense<0.000000e+00> : vector<64x32xf32>
    %2 = tpu.matmul %0, %1, %cst {dimension_numbers = #tpu.dot_dimension_numbers<[1], [0], [0], [1], [0, 0, 1, 1], [], []>} : vector<64x64xf32>, vector<64x32xf32>, vector<64x32xf32> -> vector<64x32xf32>
    %c0_3 = arith.constant 0 : index
    %c0_4 = arith.constant 0 : index
    %3 = vector.load %arg2[%c0_3, %c0_4] : memref<1x32xf32, #tpu.memory_space<vmem>>, vector<1x32xf32>
    %4 = vector.broadcast %3 : vector<1x32xf32> to vector<64x32xf32>
    %5 = arith.addf %2, %4 : vector<64x32xf32>
    %cst_5 = arith.constant 0.000000e+00 : f32
    %6 = vector.broadcast %cst_5 : f32 to vector<64x32xf32>
    %7 = arith.maximumf %5, %6 : vector<64x32xf32>
    %c0_6 = arith.constant 0 : index
    %c0_7 = arith.constant 0 : index
    %8 = vector.load %arg3[%c0_6, %c0_7] : memref<32x32xf32, #tpu.memory_space<vmem>>, vector<32x32xf32>
    %cst_8 = arith.constant dense<0.000000e+00> : vector<64x32xf32>
    %9 = tpu.matmul %7, %8, %cst_8 {dimension_numbers = #tpu.dot_dimension_numbers<[1], [0], [0], [1], [0, 0, 1, 1], [], []>} : vector<64x32xf32>, vector<32x32xf32>, vector<64x32xf32> -> vector<64x32xf32>
    %c0_9 = arith.constant 0 : index
    %c0_10 = arith.constant 0 : index
    %10 = vector.load %arg0[%c0_9, %c0_10] : memref<64x64xf32, #tpu.memory_space<vmem>>, vector<64x64xf32>
    %cst_11 = arith.constant dense<0.000000e+00> : vector<64x32xf32>
    %11 = tpu.matmul %10, %9, %cst_11 {dimension_numbers = #tpu.dot_dimension_numbers<[1], [0], [0], [1], [0, 0, 1, 1], [], []>} : vector<64x64xf32>, vector<64x32xf32>, vector<64x32xf32> -> vector<64x32xf32>
    %c0_12 = arith.constant 0 : index
    %c0_13 = arith.constant 0 : index
    %12 = vector.load %arg4[%c0_12, %c0_13] : memref<1x32xf32, #tpu.memory_space<vmem>>, vector<1x32xf32>
    %13 = vector.broadcast %12 : vector<1x32xf32> to vector<64x32xf32>
    %14 = arith.addf %11, %13 : vector<64x32xf32>
    %c0_14 = arith.constant 0 : index
    %c0_15 = arith.constant 0 : index
    %15 = vector.load %arg5[%c0_14, %c0_15] : memref<64x32xf32, #tpu.memory_space<vmem>>, vector<64x32xf32>
    tpu.vector_store %arg5[%c0_14, %c0_15], %14 {strides = array<i32>} : memref<64x32xf32, #tpu.memory_space<vmem>>, vector<64x32xf32>,
    return
  }
}

</mosaic_0001>

<llo_original>
// kernel: tpu_custom_call.1
$region0: #{tpu_custom_call.1}
  #allocation0 [shape = 'u32[]', space=smem, size = 0x4, offset = 0x4, fixed_abs, tag = 'smem constant byte address 0x4 - core index']
  #allocation1 [shape = 'u32[144,128]{1,0:T(1,128)}', space=vmem, size = 0x12000, scoped, tag = 'internal scratch']
  %s0 = inlined_call_operand.vmem [shape: f32[64,64], index: 0, kind: input, shape index: {}]
  %s1 = inlined_call_operand.vmem [shape: f32[64,32], index: 1, kind: input, shape index: {}]
  %s2 = inlined_call_operand.vmem [shape: f32[1,32], index: 2, kind: input, shape index: {}]
  %s3 = inlined_call_operand.vmem [shape: f32[32,32], index: 3, kind: input, shape index: {}]
  %s4 = inlined_call_operand.vmem [shape: f32[1,32], index: 4, kind: input, shape index: {}]
  %s5 = inlined_call_operand.vmem [shape: f32[64,32], index: 5, kind: output, shape index: {}]
  %s6 = sld [smem:[#allocation0]]
  $region30: #{tpu_custom_call.1} parent=0
    _
  %s8 = ssub.s32 1, %s6
  %s9 = scalar_select 0, %s8, %s6
  // Predicated region
  $region2: #{tpu_custom_call.1} parent=0 // pred_check
    _
  $region3: #{tpu_custom_call.1} parent=0 // pred_check_branch
    %11 = sbr.rel (0) target = $region5
  $region4: #{tpu_custom_call.1} parent=0 // pred_region
    _
  $region5: #{tpu_custom_call.1} parent=0 // pred_fallthru
    _
  // Predicated region
  $region6: #{tpu_custom_call.1} parent=0 // pred_check
    _
  $region7: #{tpu_custom_call.1} parent=0 // pred_check_branch
    %13 = sbr.rel (0) target = $region9
  $region8: #{tpu_custom_call.1} parent=0 // pred_region
    _
  $region9: #{tpu_custom_call.1} parent=0 // pred_fallthru
    _
  // Predicated region
  $region10: #{tpu_custom_call.1} parent=0 // pred_check
    _
  $region11: #{tpu_custom_call.1} parent=0 // pred_check_branch
    %15 = sbr.rel (0) target = $region13
  $region12: #{tpu_custom_call.1} parent=0 // pred_region
    _
  $region13: #{tpu_custom_call.1} parent=0 // pred_fallthru
    _
  // Predicated region
  $region14: #{tpu_custom_call.1} parent=0 // pred_check
    _
  $region15: #{tpu_custom_call.1} parent=0 // pred_check_branch
    %17 = sbr.rel (0) target = $region17
  $region16: #{tpu_custom_call.1} parent=0 // pred_region
    _
  $region17: #{tpu_custom_call.1} parent=0 // pred_fallthru
    _
  // Predicated region
  $region18: #{tpu_custom_call.1} parent=0 // pred_check
    _
  $region19: #{tpu_custom_call.1} parent=0 // pred_check_branch
    %19 = sbr.rel (0) target = $region21
  $region20: #{tpu_custom_call.1} parent=0 // pred_region
    _
  $region21: #{tpu_custom_call.1} parent=0 // pred_fallthru
    _
  %v20 = vld [vmem:[%s0] sm:$0xff]
  %v21 = vld [vmem:[%s0 + $0x8] sm:$0xff]
  %v22 = vld [vmem:[%s0 + $0x10] sm:$0xff]
  %v23 = vld [vmem:[%s0 + $0x18] sm:$0xff]
  %v24 = vld [vmem:[%s0 + $0x20] sm:$0xff]
  %v25 = vld [vmem:[%s0 + $0x28] sm:$0xff]
  %v26 = vld [vmem:[%s0 + $0x30] sm:$0xff]
  %v27 = vld [vmem:[%s0 + $0x38] sm:$0xff]
  %v28 = vld [vmem:[%s1] sm:$0xff]
  %v29 = vld [vmem:[%s1 + $0x8] sm:$0xff]
  %v30 = vld [vmem:[%s1 + $0x10] sm:$0xff]
  %v31 = vld [vmem:[%s1 + $0x18] sm:$0xff]
  %v32 = vld [vmem:[%s1 + $0x20] sm:$0xff]
  %v33 = vld [vmem:[%s1 + $0x28] sm:$0xff]
  %v34 = vld [vmem:[%s1 + $0x30] sm:$0xff]
  %v35 = vld [vmem:[%s1 + $0x38] sm:$0xff]
  %v36 = vld [vmem:[%s2] sm:$0x1]
  %v38 = vlaneseq
  %v39 = vshrl.u32 %v38, 7
  %v40 = vsub.s32 0, %v39
  %v41 = vrot.slane %v36, %v40
  %vm43 = vcmask 523264
  %v45 = vsel %vm43, %v20, 0
  %v48 = vsel %vm43, %v21, 0
  %v51 = vsel %vm43, %v22, 0
  %v54 = vsel %vm43, %v23, 0
  %v57 = vsel %vm43, %v24, 0
  %v60 = vsel %vm43, %v25, 0
  %v63 = vsel %vm43, %v26, 0
  %v66 = vsel %vm43, %v27, 0
  %68 = vmatprep.subr.mxu0 0.0
  %69 = vmatpush1.msra.mxu0 %v28
  %70 = vmatprep.subr.mxu0 0.0
  %71 = vmatpush1.msra.mxu0 %v29
  %72 = vmatprep.subr.mxu0 0.0
  %73 = vmatpush1.msra.mxu0 %v30
  %74 = vmatprep.subr.mxu0 0.0
  %75 = vmatpush1.msra.mxu0 %v31
  %76 = vmatprep.subr.mxu0 0.0
  %77 = vmatpush1.msra.mxu0 %v32
  %78 = vmatprep.subr.mxu0 0.0
  %79 = vmatpush1.msra.mxu0 %v33
  %80 = vmatprep.subr.mxu0 0.0
  %81 = vmatpush1.msra.mxu0 %v34
  %82 = vmatprep.subr.mxu0 0.0
  %83 = vmatpush1.msra.mxu0 %v35
  %84 = vmatprep.subr.mxu0 0.0
  %85 = vmatpush1.msra.mxu0 0.0
  %86 = vmatprep.subr.mxu0 0.0
  %87 = vmatpush1.msra.mxu0 0.0
  %88 = vmatprep.subr.mxu0 0.0
  %89 = vmatpush1.msra.mxu0 0.0
  %90 = vmatprep.subr.mxu0 0.0
  %91 = vmatpush1.msra.mxu0 0.0
  %92 = vmatprep.subr.mxu0 0.0
  %93 = vmatpush1.msra.mxu0 0.0
  %94 = vmatprep.subr.mxu0 0.0
  %95 = vmatpush1.msra.mxu0 0.0
  %96 = vmatprep.subr.mxu0 0.0
  %97 = vmatpush1.msra.mxu0 0.0
  %98 = vmatprep.subr.mxu0 0.0
  %99 = vmatpush1.msra.mxu0 0.0
  %100 = vmatprep.subr.mxu0 0.0
  %101 = vmatpush1.msra.mxu0 0.0
  %102 = vmatprep.subr.mxu0 0.0
  %103 = vmatpush1.msra.mxu0 0.0
  %104 = vmatprep.subr.mxu0 0.0
  %105 = vmatpush1.msra.mxu0 0.0
  %106 = vmatprep.subr.mxu0 0.0
  %107 = vmatpush1.msra.mxu0 0.0
  %108 = vmatprep.subr.mxu0 0.0
  %109 = vmatpush1.msra.mxu0 0.0
  %110 = vmatprep.subr.mxu0 0.0
  %111 = vmatpush1.msra.mxu0 0.0
  %112 = vmatprep.subr.mxu0 0.0
  %113 = vmatpush1.msra.mxu0 0.0
  %114 = vmatprep.subr.mxu0 0.0
  %115 = vmatpush1.msra.mxu0 0.0
  %116 = vmatprep.subr.mxu0 0.0
  %117 = vmatpush1.msra.mxu0 0.0
  %118 = vmatprep.subr.mxu0 0.0
  %119 = vmatpush1.msra.mxu0 0.0
  %120 = vmatprep.subr.mxu0 0.0
  %121 = vmatpush1.msra.mxu0 0.0
  %122 = vmatprep.subr.mxu0 0.0
  %123 = vmatpush1.msra.mxu0 0.0
  %124 = vmatprep.subr.mxu0 0.0
  %125 = vmatpush1.msra.mxu0 0.0
  %126 = vmatprep.subr.mxu0 0.0
  %127 = vmatpush1.msra.mxu0 0.0
  %128 = vmatprep.subr.mxu0 0.0
  %129 = vmatpush1.msra.mxu0 0.0
  %130 = vmatprep.subr.mxu0 0.0
  %131 = vmatpush1.msra.mxu0 0.0
  %132 = vmatprep.mubr.f32.mxu0 0.0
  %133 = vmatmul.mubr.f32.gmra.mrb[0].mxu0 %v45
  %v134 = vpop.f32.mrb[0].mxu0
  %v135 = vadd.f32 %v41, %v134
  %v136 = vpop.f32.mrb[0].mxu0
  %137 = vmatprep.mubr.f32.mxu0 0.0
  %138 = vmatmul.mubr.f32.gmra.mrb[0].mxu0 %v48
  %v139 = vpop.f32.mrb[0].mxu0
  %v140 = vadd.f32 %v41, %v139
  %v141 = vpop.f32.mrb[0].mxu0
  %142 = vmatprep.mubr.f32.mxu0 0.0
  %143 = vmatmul.mubr.f32.gmra.mrb[0].mxu0 %v51
  %v144 = vpop.f32.mrb[0].mxu0
  %v145 = vadd.f32 %v41, %v144
  %v146 = vpop.f32.mrb[0].mxu0
  %147 = vmatprep.mubr.f32.mxu0 0.0
  %148 = vmatmul.mubr.f32.gmra.mrb[0].mxu0 %v54
  %v149 = vpop.f32.mrb[0].mxu0
  %v150 = vadd.f32 %v41, %v149
  %v151 = vpop.f32.mrb[0].mxu0
  %152 = vmatprep.mubr.f32.mxu0 0.0
  %153 = vmatmul.mubr.f32.gmra.mrb[0].mxu0 %v57
  %v154 = vpop.f32.mrb[0].mxu0
  %v155 = vadd.f32 %v41, %v154
  %v156 = vpop.f32.mrb[0].mxu0
  %157 = vmatprep.mubr.f32.mxu0 0.0
  %158 = vmatmul.mubr.f32.gmra.mrb[0].mxu0 %v60
  %v159 = vpop.f32.mrb[0].mxu0
  %v160 = vadd.f32 %v41, %v159
  %v161 = vpop.f32.mrb[0].mxu0
  %162 = vmatprep.mubr.f32.mxu0 0.0
  %163 = vmatmul.mubr.f32.gmra.mrb[0].mxu0 %v63
  %v164 = vpop.f32.mrb[0].mxu0
  %v165 = vadd.f32 %v41, %v164
  %v166 = vpop.f32.mrb[0].mxu0
  %167 = vmatprep.mubr.f32.mxu0 0.0
  %168 = vmatmul.mubr.f32.gmra.mrb[0].mxu0 %v66
  %v169 = vpop.f32.mrb[0].mxu0
  %v170 = vadd.f32 %v41, %v169
  %v171 = vpop.f32.mrb[0].mxu0
  %172 = vdwg.mxu0
  %v173 = vmax.f32 %v135, 0.0
  %v174 = vmax.f32 %v140, 0.0
  %v175 = vmax.f32 %v145, 0.0
  %v176 = vmax.f32 %v150, 0.0
  %v177 = vmax.f32 %v155, 0.0
  %v178 = vmax.f32 %v160, 0.0
  %v179 = vmax.f32 %v165, 0.0
  %v180 = vmax.f32 %v170, 0.0
  %v181 = vld [vmem:[%s3] sm:$0xff]
  %v182 = vld [vmem:[%s3 + $0x8] sm:$0xff]
  %v183 = vld [vmem:[%s3 + $0x10] sm:$0xff]
  %v184 = vld [vmem:[%s3 + $0x18] sm:$0xff]
  %vm185 = vcmask 261120
  %v187 = vsel %vm185, %v173, 0
  %v190 = vsel %vm185, %v174, 0
  %v193 = vsel %vm185, %v175, 0
  %v196 = vsel %vm185, %v176, 0
  %v199 = vsel %vm185, %v177, 0
  %v202 = vsel %vm185, %v178, 0
  %v205 = vsel %vm185, %v179, 0
  %v208 = vsel %vm185, %v180, 0
  %210 = vmatprep.subr.mxu0 0.0
  %211 = vmatpush1.msra.mxu0 %v181
  %212 = vmatprep.subr.mxu0 0.0
  %213 = vmatpush1.msra.mxu0 %v182
  %214 = vmatprep.subr.mxu0 0.0
  %215 = vmatpush1.msra.mxu0 %v183
  %216 = vmatprep.subr.mxu0 0.0
  %217 = vmatpush1.msra.mxu0 %v184
  %218 = vmatprep.subr.mxu0 0.0
  %219 = vmatpush1.msra.mxu0 0.0
  %220 = vmatprep.subr.mxu0 0.0
  %221 = vmatpush1.msra.mxu0 0.0
  %222 = vmatprep.subr.mxu0 0.0
  %223 = vmatpush1.msra.mxu0 0.0
  %224 = vmatprep.subr.mxu0 0.0
  %225 = vmatpush1.msra.mxu0 0.0
  %226 = vmatprep.subr.mxu0 0.0
  %227 = vmatpush1.msra.mxu0 0.0
  %228 = vmatprep.subr.mxu0 0.0
  %229 = vmatpush1.msra.mxu0 0.0
  %230 = vmatprep.subr.mxu0 0.0
  %231 = vmatpush1.msra.mxu0 0.0
  %232 = vmatprep.subr.mxu0 0.0
  %233 = vmatpush1.msra.mxu0 0.0
  %234 = vmatprep.subr.mxu0 0.0
  %235 = vmatpush1.msra.mxu0 0.0
  %236 = vmatprep.subr.mxu0 0.0
  %237 = vmatpush1.msra.mxu0 0.0
  %238 = vmatprep.subr.mxu0 0.0
  %239 = vmatpush1.msra.mxu0 0.0
  %240 = vmatprep.subr.mxu0 0.0
  %241 = vmatpush1.msra.mxu0 0.0
  %242 = vmatprep.subr.mxu0 0.0
  %243 = vmatpush1.msra.mxu0 0.0
  %244 = vmatprep.subr.mxu0 0.0
  %245 = vmatpush1.msra.mxu0 0.0
  %246 = vmatprep.subr.mxu0 0.0
  %247 = vmatpush1.msra.mxu0 0.0
  %248 = vmatprep.subr.mxu0 0.0
  %249 = vmatpush1.msra.mxu0 0.0
  %250 = vmatprep.subr.mxu0 0.0
  %251 = vmatpush1.msra.mxu0 0.0
  %252 = vmatprep.subr.mxu0 0.0
  %253 = vmatpush1.msra.mxu0 0.0
  %254 = vmatprep.subr.mxu0 0.0
  %255 = vmatpush1.msra.mxu0 0.0
  %256 = vmatprep.subr.mxu0 0.0
  %257 = vmatpush1.msra.mxu0 0.0
  %258 = vmatprep.subr.mxu0 0.0
  %259 = vmatpush1.msra.mxu0 0.0
  %260 = vmatprep.subr.mxu0 0.0
  %261 = vmatpush1.msra.mxu0 0.0
  %262 = vmatprep.subr.mxu0 0.0
  %263 = vmatpush1.msra.mxu0 0.0
  %264 = vmatprep.subr.mxu0 0.0
  %265 = vmatpush1.msra.mxu0 0.0
  %266 = vmatprep.subr.mxu0 0.0
  %267 = vmatpush1.msra.mxu0 0.0
  %268 = vmatprep.subr.mxu0 0.0
  %269 = vmatpush1.msra.mxu0 0.0
  %270 = vmatprep.subr.mxu0 0.0
  %271 = vmatpush1.msra.mxu0 0.0
  %272 = vmatprep.subr.mxu0 0.0
  %273 = vmatpush1.msra.mxu0 0.0
  %274 = vmatprep.mubr.f32.mxu0 0.0
  %275 = vmatmul.mubr.f32.gmra.mrb[0].mxu0 %v187
  %v276 = vpop.f32.mrb[0].mxu0
  %v277 = vadd.f32 0.0, %v276
  %v278 = vpop.f32.mrb[0].mxu0
  %279 = vmatprep.mubr.f32.mxu0 0.0
  %280 = vmatmul.mubr.f32.gmra.mrb[0].mxu0 %v190
  %v281 = vpop.f32.mrb[0].mxu0
  %v282 = vadd.f32 0.0, %v281
  %v283 = vpop.f32.mrb[0].mxu0
  %284 = vmatprep.mubr.f32.mxu0 0.0
  %285 = vmatmul.mubr.f32.gmra.mrb[0].mxu0 %v193
  %v286 = vpop.f32.mrb[0].mxu0
  %v287 = vadd.f32 0.0, %v286
  %v288 = vpop.f32.mrb[0].mxu0
  %289 = vmatprep.mubr.f32.mxu0 0.0
  %290 = vmatmul.mubr.f32.gmra.mrb[0].mxu0 %v196
  %v291 = vpop.f32.mrb[0].mxu0
  %v292 = vadd.f32 0.0, %v291
  %v293 = vpop.f32.mrb[0].mxu0
  %294 = vmatprep.mubr.f32.mxu0 0.0
  %295 = vmatmul.mubr.f32.gmra.mrb[0].mxu0 %v199
  %v296 = vpop.f32.mrb[0].mxu0
  %v297 = vadd.f32 0.0, %v296
  %v298 = vpop.f32.mrb[0].mxu0
  %299 = vmatprep.mubr.f32.mxu0 0.0
  %300 = vmatmul.mubr.f32.gmra.mrb[0].mxu0 %v202
  %v301 = vpop.f32.mrb[0].mxu0
  %v302 = vadd.f32 0.0, %v301
  %v303 = vpop.f32.mrb[0].mxu0
  %304 = vmatprep.mubr.f32.mxu0 0.0
  %305 = vmatmul.mubr.f32.gmra.mrb[0].mxu0 %v205
  %v306 = vpop.f32.mrb[0].mxu0
  %v307 = vadd.f32 0.0, %v306
  %v308 = vpop.f32.mrb[0].mxu0
  %309 = vmatprep.mubr.f32.mxu0 0.0
  %310 = vmatmul.mubr.f32.gmra.mrb[0].mxu0 %v208
  %v311 = vpop.f32.mrb[0].mxu0
  %v312 = vadd.f32 0.0, %v311
  %v313 = vpop.f32.mrb[0].mxu0
  %314 = vdwg.mxu0
  %v315 = vld [vmem:[%s4] sm:$0x1]
  %v317 = vlaneseq
  %v318 = vshrl.u32 %v317, 7
  %v319 = vsub.s32 0, %v318
  %v320 = vrot.slane %v315, %v319
  %322 = vmatprep.subr.mxu0 0.0
  %323 = vmatpush1.msra.mxu0 %v277
  %324 = vmatprep.subr.mxu0 0.0
  %325 = vmatpush1.msra.mxu0 %v282
  %326 = vmatprep.subr.mxu0 0.0
  %327 = vmatpush1.msra.mxu0 %v287
  %328 = vmatprep.subr.mxu0 0.0
  %329 = vmatpush1.msra.mxu0 %v292
  %330 = vmatprep.subr.mxu0 0.0
  %331 = vmatpush1.msra.mxu0 %v297
  %332 = vmatprep.subr.mxu0 0.0
  %333 = vmatpush1.msra.mxu0 %v302
  %334 = vmatprep.subr.mxu0 0.0
  %335 = vmatpush1.msra.mxu0 %v307
  %336 = vmatprep.subr.mxu0 0.0
  %337 = vmatpush1.msra.mxu0 %v312
  %338 = vmatprep.subr.mxu0 0.0
  %339 = vmatpush1.msra.mxu0 0.0
  %340 = vmatprep.subr.mxu0 0.0
  %341 = vmatpush1.msra.mxu0 0.0
  %342 = vmatprep.subr.mxu0 0.0
  %343 = vmatpush1.msra.mxu0 0.0
  %344 = vmatprep.subr.mxu0 0.0
  %345 = vmatpush1.msra.mxu0 0.0
  %346 = vmatprep.subr.mxu0 0.0
  %347 = vmatpush1.msra.mxu0 0.0
  %348 = vmatprep.subr.mxu0 0.0
  %349 = vmatpush1.msra.mxu0 0.0
  %350 = vmatprep.subr.mxu0 0.0
  %351 = vmatpush1.msra.mxu0 0.0
  %352 = vmatprep.subr.mxu0 0.0
  %353 = vmatpush1.msra.mxu0 0.0
  %354 = vmatprep.subr.mxu0 0.0
  %355 = vmatpush1.msra.mxu0 0.0
  %356 = vmatprep.subr.mxu0 0.0
  %357 = vmatpush1.msra.mxu0 0.0
  %358 = vmatprep.subr.mxu0 0.0
  %359 = vmatpush1.msra.mxu0 0.0
  %360 = vmatprep.subr.mxu0 0.0
  %361 = vmatpush1.msra.mxu0 0.0
  %362 = vmatprep.subr.mxu0 0.0
  %363 = vmatpush1.msra.mxu0 0.0
  %364 = vmatprep.subr.mxu0 0.0
  %365 = vmatpush1.msra.mxu0 0.0
  %366 = vmatprep.subr.mxu0 0.0
  %367 = vmatpush1.msra.mxu0 0.0
  %368 = vmatprep.subr.mxu0 0.0
  %369 = vmatpush1.msra.mxu0 0.0
  %370 = vmatprep.subr.mxu0 0.0
  %371 = vmatpush1.msra.mxu0 0.0
  %372 = vmatprep.subr.mxu0 0.0
  %373 = vmatpush1.msra.mxu0 0.0
  %374 = vmatprep.subr.mxu0 0.0
  %375 = vmatpush1.msra.mxu0 0.0
  %376 = vmatprep.subr.mxu0 0.0
  %377 = vmatpush1.msra.mxu0 0.0
  %378 = vmatprep.subr.mxu0 0.0
  %379 = vmatpush1.msra.mxu0 0.0
  %380 = vmatprep.subr.mxu0 0.0
  %381 = vmatpush1.msra.mxu0 0.0
  %382 = vmatprep.subr.mxu0 0.0
  %383 = vmatpush1.msra.mxu0 0.0
  %384 = vmatprep.subr.mxu0 0.0
  %385 = vmatpush1.msra.mxu0 0.0
  %386 = vmatprep.mubr.f32.mxu0 0.0
  %387 = vmatmul.mubr.f32.gmra.mrb[0].mxu0 %v45
  %v388 = vpop.f32.mrb[0].mxu0
  %v389 = vadd.f32 %v320, %v388
  %v390 = vpop.f32.mrb[0].mxu0
  %391 = vmatprep.mubr.f32.mxu0 0.0
  %392 = vmatmul.mubr.f32.gmra.mrb[0].mxu0 %v48
  %v393 = vpop.f32.mrb[0].mxu0
  %v394 = vadd.f32 %v320, %v393
  %v395 = vpop.f32.mrb[0].mxu0
  %396 = vmatprep.mubr.f32.mxu0 0.0
  %397 = vmatmul.mubr.f32.gmra.mrb[0].mxu0 %v51
  %v398 = vpop.f32.mrb[0].mxu0
  %v399 = vadd.f32 %v320, %v398
  %v400 = vpop.f32.mrb[0].mxu0
  %401 = vmatprep.mubr.f32.mxu0 0.0
  %402 = vmatmul.mubr.f32.gmra.mrb[0].mxu0 %v54
  %v403 = vpop.f32.mrb[0].mxu0
  %v404 = vadd.f32 %v320, %v403
  %v405 = vpop.f32.mrb[0].mxu0
  %406 = vmatprep.mubr.f32.mxu0 0.0
  %407 = vmatmul.mubr.f32.gmra.mrb[0].mxu0 %v57
  %v408 = vpop.f32.mrb[0].mxu0
  %v409 = vadd.f32 %v320, %v408
  %v410 = vpop.f32.mrb[0].mxu0
  %411 = vmatprep.mubr.f32.mxu0 0.0
  %412 = vmatmul.mubr.f32.gmra.mrb[0].mxu0 %v60
  %v413 = vpop.f32.mrb[0].mxu0
  %v414 = vadd.f32 %v320, %v413
  %v415 = vpop.f32.mrb[0].mxu0
  %416 = vmatprep.mubr.f32.mxu0 0.0
  %417 = vmatmul.mubr.f32.gmra.mrb[0].mxu0 %v63
  %v418 = vpop.f32.mrb[0].mxu0
  %v419 = vadd.f32 %v320, %v418
  %v420 = vpop.f32.mrb[0].mxu0
  %421 = vmatprep.mubr.f32.mxu0 0.0
  %422 = vmatmul.mubr.f32.gmra.mrb[0].mxu0 %v66
  %v423 = vpop.f32.mrb[0].mxu0
  %v424 = vadd.f32 %v320, %v423
  %v425 = vpop.f32.mrb[0].mxu0
  %426 = vdwg.mxu0
  %427 = vst.msk [vmem:[%s5] sm:$0xff] %vm185, %v389
  %428 = vst.msk [vmem:[%s5 + $0x8] sm:$0xff] %vm185, %v394
  %429 = vst.msk [vmem:[%s5 + $0x10] sm:$0xff] %vm185, %v399
  %430 = vst.msk [vmem:[%s5 + $0x18] sm:$0xff] %vm185, %v404
  %431 = vst.msk [vmem:[%s5 + $0x20] sm:$0xff] %vm185, %v409
  %432 = vst.msk [vmem:[%s5 + $0x28] sm:$0xff] %vm185, %v414
  %433 = vst.msk [vmem:[%s5 + $0x30] sm:$0xff] %vm185, %v419
  %434 = vst.msk [vmem:[%s5 + $0x38] sm:$0xff] %vm185, %v424
  // Predicated region
  $region22: #{tpu_custom_call.1} parent=0 // pred_check
    _
  $region23: #{tpu_custom_call.1} parent=0 // pred_check_branch
    %436 = sbr.rel (0) target = $region25
  $region24: #{tpu_custom_call.1} parent=0 // pred_region
    _
  $region25: #{tpu_custom_call.1} parent=0 // pred_fallthru
    _
  // Predicated region
  $region26: #{tpu_custom_call.1} parent=0 // pred_check
    _
  $region27: #{tpu_custom_call.1} parent=0 // pred_check_branch
    %438 = sbr.rel (0) target = $region29
  $region28: #{tpu_custom_call.1} parent=0 // pred_region
    _
  $region29: #{tpu_custom_call.1} parent=0 // pred_fallthru
    _

</llo_original>
